<compile_context>
chip_gen: v5e
topology: v5e:2x2
jax: 0.10.0
libtpu: 0.0.40
codegen_flags: <defaults>
</compile_context>

<pallas_src>
import functools

import jax
import jax.numpy as jnp
from jax.experimental import pallas as pl
from jax.experimental.pallas import tpu as pltpu

LANE = 128      # lane width (last-dim alignment)
SUBLANE = 8     # f32 sublane alignment (second-to-last dim)


def _round_up(n, m):
    return ((n + m - 1) // m) * m


def _choose_tile(B, block_b):
    """Batch tile: sublane-aligned, large enough to amortize step overhead,
    but capped at ceil(B/2) so big batches give >=2 grid steps (megacore)."""
    block_b = _round_up(max(block_b, SUBLANE), SUBLANE)
    if B <= 2 * SUBLANE:
        return _round_up(max(B, 1), SUBLANE)
    half = _round_up((B + 1) // 2, SUBLANE)
    return max(SUBLANE, min(block_b, half))


def mlp_kernel(x_ref, w1_ref, b1_ref, w2_ref, b2_ref, o_ref):
    # hidden = relu(x @ W1 + b1)   (MXU matmul, f32 accumulate; VPU bias+relu)
    h = jnp.dot(x_ref[...], w1_ref[...], preferred_element_type=jnp.float32)
    h = jnp.maximum(h + b1_ref[...], 0.0)
    # logits = hidden @ W2 + b2
    out = jnp.dot(h.astype(w2_ref.dtype), w2_ref[...],
                  preferred_element_type=jnp.float32)
    o_ref[...] = (out + b2_ref[...]).astype(o_ref.dtype)


@functools.partial(jax.jit, static_argnames=("block_b",))
def net_forward(x, w1p, b1p, w2p, b2p, block_b=2048):
    """x: [B, obs]; prepared params (see prepare_params):
       w1p: [obs, hid_p], b1p: [1, hid_p], w2p: [hid_p, n_act], b2p: [1, n_act]
       -> logits [B, n_act]."""
    B, obs = x.shape
    hid_p = w1p.shape[1]
    n_act = w2p.shape[1]

    tb = _choose_tile(B, block_b)
    bp = _round_up(B, tb)

    # Only the batch dim is padded (to a tile multiple); usually tiny or zero.
    xp = x if bp == B else jnp.zeros((bp, obs), x.dtype).at[:B].set(x)

    grid = (bp // tb,)

    flops = 2 * bp * (obs * hid_p + hid_p * n_act)
    act_bytes = jnp.dtype(x.dtype).itemsize
    w_bytes = jnp.dtype(w1p.dtype).itemsize
    bytes_accessed = (bp * obs * act_bytes            # x read
                      + bp * n_act * act_bytes        # logits write
                      + (w1p.size + b1p.size + w2p.size + b2p.size) * w_bytes)

    out = pl.pallas_call(
        mlp_kernel,
        out_shape=jax.ShapeDtypeStruct((bp, n_act), x.dtype),
        grid_spec=pltpu.PrefetchScalarGridSpec(
            num_scalar_prefetch=0,
            grid=grid,
            in_specs=[
                # x: tiled along batch (double-buffered by Pallas); full obs dim.
                pl.BlockSpec((tb, obs), lambda i: (i, 0)),
                # Weights / biases: resident across the whole grid.
                pl.BlockSpec((obs, hid_p), lambda i: (0, 0)),
                pl.BlockSpec((1, hid_p), lambda i: (0, 0)),
                pl.BlockSpec((hid_p, n_act), lambda i: (0, 0)),
                pl.BlockSpec((1, n_act), lambda i: (0, 0)),
            ],
            out_specs=pl.BlockSpec((tb, n_act), lambda i: (i, 0)),
        ),
        compiler_params=pltpu.CompilerParams(
            # Independent batch tiles -> shard across both TCs on v7x.
            dimension_semantics=("parallel",),
        ),
        cost_estimate=pl.CostEstimate(
            flops=int(flops), transcendentals=0,
            bytes_accessed=int(bytes_accessed)),
    )(xp, w1p, b1p, w2p, b2p)

    # Drop batch padding (output feature dim is already exact).
    return out[:B]


def init_params(key, obs_size, hidden_size, n_actions, dtype=jnp.float32):
    """Deterministic PyTorch-style (uniform +/- 1/sqrt(fan_in)) init.
    Weights stored pre-transposed: [in, out]; biases 1D."""
    k1, k2, k3, k4 = jax.random.split(key, 4)
    bound1 = 1.0 / (obs_size ** 0.5)
    bound2 = 1.0 / (hidden_size ** 0.5)
    w1 = jax.random.uniform(k1, (obs_size, hidden_size), dtype, -bound1, bound1)
    b1 = jax.random.uniform(k2, (hidden_size,), dtype, -bound1, bound1)
    w2 = jax.random.uniform(k3, (hidden_size, n_actions), dtype, -bound2, bound2)
    b2 = jax.random.uniform(k4, (n_actions,), dtype, -bound2, bound2)
    return w1, b1, w2, b2


def prepare_params(w1, b1, w2, b2):
    """One-time (per model, NOT per call) prep: pad the hidden dim to a lane
    multiple so the in-kernel activation is lane-dense, and reshape biases to
    broadcastable rows.  Zero padding is mathematically inert."""
    obs, hid = w1.shape
    n_act = w2.shape[1]
    hid_p = _round_up(hid, LANE)
    w1p = jnp.zeros((obs, hid_p), w1.dtype).at[:, :hid].set(w1)
    b1p = jnp.zeros((1, hid_p), b1.dtype).at[:, :hid].set(b1.reshape(1, hid))
    w2p = jnp.zeros((hid_p, n_act), w2.dtype).at[:hid, :].set(w2)
    b2p = b2.reshape(1, n_act)
    return w1p, b1p, w2p, b2p


def _reference(x, w1, b1, w2, b2):
    return jnp.maximum(x @ w1 + b1[None, :], 0.0) @ w2 + b2[None, :]


if __name__ == "__main__":
    obs_size, hidden_size, n_actions = 4, 32, 2   # CartPole-sized policy net
    key = jax.random.PRNGKey(0)
    kx, kx2, kp = jax.random.split(key, 3)
    w1, b1, w2, b2 = init_params(kp, obs_size, hidden_size, n_actions)
    w1p, b1p, w2p, b2p = prepare_params(w1, b1, w2, b2)   # hoisted, once

    # Small batch (single grid step).
    x_small = jax.random.normal(kx, (8, obs_size), jnp.float32)
    out_small = jax.block_until_ready(net_forward(x_small, w1p, b1p, w2p, b2p))
    ref_small = _reference(x_small, w1, b1, w2, b2)
    assert out_small.shape == (8, n_actions)
    assert jnp.allclose(out_small, ref_small, atol=1e-4, rtol=1e-4)

    # Larger ragged batch: exercises the >=2-step grid + batch-padding path.
    x_big = jax.random.normal(kx2, (1000, obs_size), jnp.float32)
    out_big = jax.block_until_ready(net_forward(x_big, w1p, b1p, w2p, b2p))
    ref_big = _reference(x_big, w1, b1, w2, b2)
    assert out_big.shape == (1000, n_actions)
    assert jnp.allclose(out_big, ref_big, atol=1e-4, rtol=1e-4)

    print("KERNEL_OK")
</pallas_src>

<mosaic_0001>
module attributes {stable_mosaic.version = 11 : i64} {
  func.func @mlp_kernel(%arg0: i32, %arg1: memref<8x4xf32, #tpu.memory_space<vmem>>, %arg2: memref<4x128xf32, #tpu.memory_space<vmem>>, %arg3: memref<1x128xf32, #tpu.memory_space<vmem>>, %arg4: memref<128x2xf32, #tpu.memory_space<vmem>>, %arg5: memref<1x2xf32, #tpu.memory_space<vmem>>, %arg6: memref<8x2xf32, #tpu.memory_space<vmem>>) attributes {dimension_semantics = [#tpu.dimension_semantics<parallel>], iteration_bounds = array<i64: 1>, scalar_prefetch = 0 : i64, scratch_operands = 0 : i64, tpu.core_type = #tpu.core_type<tc>, window_params = [{transform_indices = @transform_0, window_bounds = array<i64: 8, 4>}, {pipeline_mode = #tpu.pipeline_mode<synchronous>, transform_indices = @transform_1, window_bounds = array<i64: 4, 128>}, {pipeline_mode = #tpu.pipeline_mode<synchronous>, transform_indices = @transform_2, window_bounds = array<i64: 1, 128>}, {pipeline_mode = #tpu.pipeline_mode<synchronous>, transform_indices = @transform_3, window_bounds = array<i64: 128, 2>}, {pipeline_mode = #tpu.pipeline_mode<synchronous>, transform_indices = @transform_4, window_bounds = array<i64: 1, 2>}, {transform_indices = @transform_5, window_bounds = array<i64: 8, 2>}]} {
    %c0 = arith.constant 0 : index
    %c0_0 = arith.constant 0 : index
    %0 = vector.load %arg1[%c0, %c0_0] : memref<8x4xf32, #tpu.memory_space<vmem>>, vector<8x4xf32>
    %c0_1 = arith.constant 0 : index
    %c0_2 = arith.constant 0 : index
    %1 = vector.load %arg2[%c0_1, %c0_2] : memref<4x128xf32, #tpu.memory_space<vmem>>, vector<4x128xf32>
    %cst = arith.constant dense<0.000000e+00> : vector<8x128xf32>
    %2 = tpu.matmul %0, %1, %cst {dimension_numbers = #tpu.dot_dimension_numbers<[1], [0], [0], [1], [0, 0, 1, 1], [], []>} : vector<8x4xf32>, vector<4x128xf32>, vector<8x128xf32> -> vector<8x128xf32>
    %c0_3 = arith.constant 0 : index
    %c0_4 = arith.constant 0 : index
    %3 = vector.load %arg3[%c0_3, %c0_4] : memref<1x128xf32, #tpu.memory_space<vmem>>, vector<1x128xf32>
    %4 = vector.broadcast %3 : vector<1x128xf32> to vector<8x128xf32>
    %5 = arith.addf %2, %4 : vector<8x128xf32>
    %cst_5 = arith.constant 0.000000e+00 : f32
    %6 = vector.broadcast %cst_5 : f32 to vector<8x128xf32>
    %7 = arith.maximumf %5, %6 : vector<8x128xf32>
    %c0_6 = arith.constant 0 : index
    %c0_7 = arith.constant 0 : index
    %8 = vector.load %arg4[%c0_6, %c0_7] : memref<128x2xf32, #tpu.memory_space<vmem>>, vector<128x2xf32>
    %cst_8 = arith.constant dense<0.000000e+00> : vector<8x2xf32>
    %9 = tpu.matmul %7, %8, %cst_8 {dimension_numbers = #tpu.dot_dimension_numbers<[1], [0], [0], [1], [0, 0, 1, 1], [], []>} : vector<8x128xf32>, vector<128x2xf32>, vector<8x2xf32> -> vector<8x2xf32>
    %c0_9 = arith.constant 0 : index
    %c0_10 = arith.constant 0 : index
    %10 = vector.load %arg5[%c0_9, %c0_10] : memref<1x2xf32, #tpu.memory_space<vmem>>, vector<1x2xf32>
    %11 = vector.broadcast %10 : vector<1x2xf32> to vector<8x2xf32>
    %12 = arith.addf %9, %11 : vector<8x2xf32>
    %c0_11 = arith.constant 0 : index
    %c0_12 = arith.constant 0 : index
    %13 = vector.load %arg6[%c0_11, %c0_12] : memref<8x2xf32, #tpu.memory_space<vmem>>, vector<8x2xf32>
    tpu.vector_store %arg6[%c0_11, %c0_12], %12 {strides = array<i32>} : memref<8x2xf32, #tpu.memory_space<vmem>>, vector<8x2xf32>,
    return
  }
  func.func @transform_0(%arg0: i32) -> (i32, i32) {
    %c0_i32 = arith.constant 0 : i32
    %c0_i32_0 = arith.constant 0 : i32
    return %arg0, %c0_i32 : i32, i32
  }
  func.func @transform_1(%arg0: i32) -> (i32, i32) {
    %c0_i32 = arith.constant 0 : i32
    %c0_i32_0 = arith.constant 0 : i32
    %c0_i32_1 = arith.constant 0 : i32
    return %c0_i32, %c0_i32_0 : i32, i32
  }
  func.func @transform_2(%arg0: i32) -> (i32, i32) {
    %c0_i32 = arith.constant 0 : i32
    %c0_i32_0 = arith.constant 0 : i32
    %c0_i32_1 = arith.constant 0 : i32
    return %c0_i32, %c0_i32_0 : i32, i32
  }
  func.func @transform_3(%arg0: i32) -> (i32, i32) {
    %c0_i32 = arith.constant 0 : i32
    %c0_i32_0 = arith.constant 0 : i32
    %c0_i32_1 = arith.constant 0 : i32
    return %c0_i32, %c0_i32_0 : i32, i32
  }
  func.func @transform_4(%arg0: i32) -> (i32, i32) {
    %c0_i32 = arith.constant 0 : i32
    %c0_i32_0 = arith.constant 0 : i32
    %c0_i32_1 = arith.constant 0 : i32
    return %c0_i32, %c0_i32_0 : i32, i32
  }
  func.func @transform_5(%arg0: i32) -> (i32, i32) {
    %c0_i32 = arith.constant 0 : i32
    %c0_i32_0 = arith.constant 0 : i32
    return %arg0, %c0_i32 : i32, i32
  }
}

</mosaic_0001>

<llo_original>
// kernel: net_forward.1
$region0: #{net_forward.1}
  #allocation0 [shape = 'u32[]', space=smem, size = 0x4, offset = 0x4, fixed_abs, tag = 'smem constant byte address 0x4 - core index']
  #allocation1 [shape = 'u32[72,128]{1,0:T(1,128)}', space=vmem, size = 0x9000, scoped, tag = 'internal scratch']
  %s0 = inlined_call_operand.vmem [shape: f32[8,4], index: 0, kind: input, shape index: {}]
  %s1 = inlined_call_operand.vmem [shape: f32[4,128], index: 1, kind: input, shape index: {}]
  %s2 = inlined_call_operand.vmem [shape: f32[1,128], index: 2, kind: input, shape index: {}]
  %s3 = inlined_call_operand.vmem [shape: f32[128,2], index: 3, kind: input, shape index: {}]
  %s4 = inlined_call_operand.vmem [shape: f32[1,2], index: 4, kind: input, shape index: {}]
  %s5 = inlined_call_operand.vmem [shape: f32[8,2], index: 5, kind: output, shape index: {}]
  %s6 = sld [smem:[#allocation0]]
  $region30: #{net_forward.1} parent=0
    _
  %s8 = ssub.s32 1, %s6
  %s9 = scalar_select 0, %s8, %s6
  // Predicated region
  $region2: #{net_forward.1} parent=0 // pred_check
    _
  $region3: #{net_forward.1} parent=0 // pred_check_branch
    %11 = sbr.rel (0) target = $region5
  $region4: #{net_forward.1} parent=0 // pred_region
    _
  $region5: #{net_forward.1} parent=0 // pred_fallthru
    _
  // Predicated region
  $region6: #{net_forward.1} parent=0 // pred_check
    _
  $region7: #{net_forward.1} parent=0 // pred_check_branch
    %13 = sbr.rel (0) target = $region9
  $region8: #{net_forward.1} parent=0 // pred_region
    _
  $region9: #{net_forward.1} parent=0 // pred_fallthru
    _
  // Predicated region
  $region10: #{net_forward.1} parent=0 // pred_check
    _
  $region11: #{net_forward.1} parent=0 // pred_check_branch
    %15 = sbr.rel (0) target = $region13
  $region12: #{net_forward.1} parent=0 // pred_region
    _
  $region13: #{net_forward.1} parent=0 // pred_fallthru
    _
  // Predicated region
  $region14: #{net_forward.1} parent=0 // pred_check
    _
  $region15: #{net_forward.1} parent=0 // pred_check_branch
    %17 = sbr.rel (0) target = $region17
  $region16: #{net_forward.1} parent=0 // pred_region
    _
  $region17: #{net_forward.1} parent=0 // pred_fallthru
    _
  // Predicated region
  $region18: #{net_forward.1} parent=0 // pred_check
    _
  $region19: #{net_forward.1} parent=0 // pred_check_branch
    %19 = sbr.rel (0) target = $region21
  $region20: #{net_forward.1} parent=0 // pred_region
    _
  $region21: #{net_forward.1} parent=0 // pred_fallthru
    _
  %v20 = vld [vmem:[%s0] sm:$0xff]
  %v21 = vld [vmem:[%s1] sm:$0xf]
  %v22 = vld [vmem:[%s2] sm:$0x1]
  %v24 = vperm.slane %v22, 0
  %vm26 = vcmask 31744
  %v28 = vsel %vm26, %v20, 0
  %vm30 = vcmask 1043456
  %v32 = vsel %vm30, %v21, 0
  %34 = vmatpush.msra.mxu0 0.0
  %35 = vmatpush.msra.mxu0 0.0
  %36 = vmatpush.msra.mxu0 0.0
  %37 = vmatpush.msra.mxu0 0.0
  %38 = vmatpush.msra.mxu0 0.0
  %39 = vmatpush.msra.mxu0 0.0
  %40 = vmatpush.msra.mxu0 0.0
  %41 = vmatpush.msra.mxu0 0.0
  %42 = vmatpush.msra.mxu0 0.0
  %43 = vmatpush.msra.mxu0 0.0
  %44 = vmatpush.msra.mxu0 0.0
  %45 = vmatpush.msra.mxu0 0.0
  %46 = vmatpush.msra.mxu0 0.0
  %47 = vmatpush.msra.mxu0 0.0
  %48 = vmatpush.msra.mxu0 0.0
  %49 = vmatpush.msra.mxu0 %v32
  %50 = vmatmul.f32.gmra.mxu0 %v28
  %v51 = vpop.f32.mrf.mxu0
  %v52 = vadd.f32 %v24, %v51
  %53 = vdwg.mxu0
  %v54 = vmax.f32 %v52, 0.0
  %v55 = vld [vmem:[%s3] sm:$0xff]
  %v56 = vld [vmem:[%s3 + $0x8] sm:$0xff]
  %v57 = vld [vmem:[%s3 + $0x10] sm:$0xff]
  %v58 = vld [vmem:[%s3 + $0x18] sm:$0xff]
  %v59 = vld [vmem:[%s3 + $0x20] sm:$0xff]
  %v60 = vld [vmem:[%s3 + $0x28] sm:$0xff]
  %v61 = vld [vmem:[%s3 + $0x30] sm:$0xff]
  %v62 = vld [vmem:[%s3 + $0x38] sm:$0xff]
  %v63 = vld [vmem:[%s3 + $0x40] sm:$0xff]
  %v64 = vld [vmem:[%s3 + $0x48] sm:$0xff]
  %v65 = vld [vmem:[%s3 + $0x50] sm:$0xff]
  %v66 = vld [vmem:[%s3 + $0x58] sm:$0xff]
  %v67 = vld [vmem:[%s3 + $0x60] sm:$0xff]
  %v68 = vld [vmem:[%s3 + $0x68] sm:$0xff]
  %v69 = vld [vmem:[%s3 + $0x70] sm:$0xff]
  %v70 = vld [vmem:[%s3 + $0x78] sm:$0xff]
  %v71 = vld [vmem:[%s4] sm:$0x1]
  %v73 = vperm.slane %v71, 0
  %75 = vmatpush.msra.mxu0 %v70
  %76 = vmatpush.msra.mxu0 %v69
  %77 = vmatpush.msra.mxu0 %v68
  %78 = vmatpush.msra.mxu0 %v67
  %79 = vmatpush.msra.mxu0 %v66
  %80 = vmatpush.msra.mxu0 %v65
  %81 = vmatpush.msra.mxu0 %v64
  %82 = vmatpush.msra.mxu0 %v63
  %83 = vmatpush.msra.mxu0 %v62
  %84 = vmatpush.msra.mxu0 %v61
  %85 = vmatpush.msra.mxu0 %v60
  %86 = vmatpush.msra.mxu0 %v59
  %87 = vmatpush.msra.mxu0 %v58
  %88 = vmatpush.msra.mxu0 %v57
  %89 = vmatpush.msra.mxu0 %v56
  %90 = vmatpush.msra.mxu0 %v55
  %91 = vmatmul.f32.gmra.mxu0 %v54
  %v92 = vpop.f32.mrf.mxu0
  %v93 = vadd.f32 %v73, %v92
  %94 = vdwg.mxu0
  %vm95 = vcmask 15360
  %96 = vst.msk [vmem:[%s5] sm:$0xff] %vm95, %v93
  // Predicated region
  $region22: #{net_forward.1} parent=0 // pred_check
    _
  $region23: #{net_forward.1} parent=0 // pred_check_branch
    %98 = sbr.rel (0) target = $region25
  $region24: #{net_forward.1} parent=0 // pred_region
    _
  $region25: #{net_forward.1} parent=0 // pred_fallthru
    _
  // Predicated region
  $region26: #{net_forward.1} parent=0 // pred_check
    _
  $region27: #{net_forward.1} parent=0 // pred_check_branch
    %100 = sbr.rel (0) target = $region29
  $region28: #{net_forward.1} parent=0 // pred_region
    _
  $region29: #{net_forward.1} parent=0 // pred_fallthru
    _

</llo_original>
